<compile_context>
chip_gen: v7x
topology: tpu7x:2x2x1
jax: 0.10.0
libtpu: 0.0.40
codegen_flags: <defaults>
</compile_context>

<pallas_src>
import functools

import jax
import jax.numpy as jnp
from jax.experimental import pallas as pl
from jax.experimental.pallas import tpu as pltpu


def _round_up(n, m):
    return ((n + m - 1) // m) * m


def _default_bf16_act():
    """bf16 tanh on v6e/v7x (bf16 EUP); f32 on older chips."""
    try:
        kind = jax.devices()[0].device_kind.lower()
    except Exception:
        return False
    return ("v6" in kind) or ("v7" in kind)


def ffnn_kernel(use_bf16_act, x_ref, vw_ref, vb_ref, ww_ref, wb_ref, o_ref):
    # x_ref:  (TB, inp_p)     bf16   batch tile of inputs
    # vw_ref: (inp_p, hid_p)  bf16   V.weight, pre-transposed + zero-padded
    # vb_ref: (1, hid_p)      f32    V.bias
    # ww_ref: (hid_p, out_p)  bf16   W.weight, pre-transposed + zero-padded
    # wb_ref: (1, out_p)      f32    W.bias; padded class lanes baked to -1e30
    # o_ref:  (TB, out_p)     f32    log-probabilities (padded lanes ~ -1e30)
    x = x_ref[...]

    # h = tanh(x @ V^T + b_V)  -- canonical (M,K)x(K,N) MXU shape, f32 accumulate.
    h = jnp.dot(x, vw_ref[...], preferred_element_type=jnp.float32) + vb_ref[...]
    if use_bf16_act:
        h = jnp.tanh(h.astype(jnp.bfloat16))        # bf16 EUP (v6e/v7x)
    else:
        h = jnp.tanh(h).astype(jnp.bfloat16)        # f32 EUP (v5e), cast for MXU

    # z = h @ W^T + b_W ; padded class lanes get -1e30 via the baked bias and
    # fall out of max / logsumexp automatically.
    z = jnp.dot(h, ww_ref[...], preferred_element_type=jnp.float32) + wb_ref[...]

    # Numerically stable log_softmax over the class (lane) axis.
    m = jnp.max(z, axis=-1, keepdims=True)
    shifted = z - m
    lse = jnp.log(jnp.sum(jnp.exp(shifted), axis=-1, keepdims=True))
    o_ref[...] = shifted - lse


def prepare_params(v_w, v_b, w_w, w_b):
    """One-time cold path: transpose, zero-pad to lane-dense shapes, cast to bf16,
    and bake the padded-class mask into W's bias."""
    hid, inp = v_w.shape
    out, _ = w_w.shape
    inp_p, hid_p, out_p = (_round_up(d, 128) for d in (inp, hid, out))

    vw_p = jnp.zeros((inp_p, hid_p), jnp.bfloat16).at[:inp, :hid].set(
        v_w.T.astype(jnp.bfloat16))
    vb_p = jnp.zeros((1, hid_p), jnp.float32).at[0, :hid].set(
        v_b.astype(jnp.float32))
    ww_p = jnp.zeros((hid_p, out_p), jnp.bfloat16).at[:hid, :out].set(
        w_w.T.astype(jnp.bfloat16))
    # Large finite negative (not -inf) on padded class lanes: they vanish in
    # max/logsumexp with no inf-arithmetic NaN hazard.
    wb_p = jnp.full((1, out_p), -1e30, jnp.float32).at[0, :out].set(
        w_b.astype(jnp.float32))

    dims = (inp, hid, out, inp_p, hid_p, out_p)
    return (vw_p, vb_p, ww_p, wb_p), dims


def _vmem_bytes(tb, inp_p, hid_p, out_p):
    weights = 2 * (inp_p * hid_p + hid_p * out_p)   # bf16, single-buffered
    biases = 4 * (hid_p + out_p)                    # f32, single-buffered
    x_tiles = 2 * tb * inp_p * 2                    # bf16 input tile, double-buffered
    o_tiles = 2 * tb * out_p * 4                    # f32 output tile, double-buffered
    inter = tb * hid_p * 4 + 2 * tb * out_p * 4     # live f32 h / z / softmax temps
    return weights + biases + x_tiles + o_tiles + inter


def _pick_batch_tile(B, inp_p, hid_p, out_p, budget=48 << 20):
    if B <= 16:
        tb = _round_up(B, 8)
    elif B <= 512:
        # Two grid steps so both v7x TensorCores get work ("parallel" axis);
        # no-op cost on single-TC v5e/v6e.
        tb = _round_up(pl.cdiv(B, 2), 8)
    else:
        tb = 512  # ~85% of HBM roofline territory; shrink only if VMEM-bound.
    while tb > 8 and _vmem_bytes(tb, inp_p, hid_p, out_p) > budget:
        tb = _round_up(tb // 2, 8)
    return tb


def _vmem_limit_bytes(tb, inp_p, hid_p, out_p):
    need = int(1.3 * _vmem_bytes(tb, inp_p, hid_p, out_p)) + (2 << 20)
    # Never below the safe scoped default, never above v7x's 64 MiB/TC.
    return int(min(max(need, 32 << 20), 64 << 20))


def ffnn_forward(x, params, dims, use_bf16_act=None):
    """x: (inp,) or (B, inp). Returns log-probabilities of shape (out,) / (B, out)."""
    inp, hid, out, inp_p, hid_p, out_p = dims
    vw_p, vb_p, ww_p, wb_p = params
    if use_bf16_act is None:
        use_bf16_act = _default_bf16_act()

    squeeze = (x.ndim == 1)
    x2 = x[None, :] if squeeze else x
    B = x2.shape[0]

    # Per-call work on x is lane-pad + bf16 cast only (no row padding / slicing).
    x_bf = x2.astype(jnp.bfloat16)
    if inp_p != inp:
        x_bf = jnp.pad(x_bf, ((0, 0), (0, inp_p - inp)))

    tb = _pick_batch_tile(B, inp_p, hid_p, out_p)
    grid = (pl.cdiv(B, tb),)

    kernel = functools.partial(ffnn_kernel, bool(use_bf16_act))
    y_p = pl.pallas_call(
        kernel,
        out_shape=jax.ShapeDtypeStruct((B, out_p), jnp.float32),
        grid=grid,
        in_specs=[
            pl.BlockSpec((tb, inp_p), lambda i: (i, 0)),
            # Constant-index params: single buffer (no pointless double-buffering).
            pl.BlockSpec((inp_p, hid_p), lambda i: (0, 0),
                         pipeline_mode=pl.Buffered(1)),
            pl.BlockSpec((1, hid_p), lambda i: (0, 0),
                         pipeline_mode=pl.Buffered(1)),
            pl.BlockSpec((hid_p, out_p), lambda i: (0, 0),
                         pipeline_mode=pl.Buffered(1)),
            pl.BlockSpec((1, out_p), lambda i: (0, 0),
                         pipeline_mode=pl.Buffered(1)),
        ],
        out_specs=pl.BlockSpec((tb, out_p), lambda i: (i, 0)),
        compiler_params=pltpu.CompilerParams(
            dimension_semantics=("parallel",),
            vmem_limit_bytes=_vmem_limit_bytes(tb, inp_p, hid_p, out_p)),
    )(x_bf, vw_p, vb_p, ww_p, wb_p)

    y = y_p[:, :out] if out_p != out else y_p
    return y[0] if squeeze else y


def xavier_uniform(key, shape):
    # matches nn.init.xavier_uniform_ for a Linear weight of shape (fan_out, fan_in)
    fan_out, fan_in = shape
    limit = jnp.sqrt(6.0 / (fan_in + fan_out))
    return jax.random.uniform(key, shape, jnp.float32, -limit, limit)


def linear_bias_init(key, fan_in, fan_out):
    # PyTorch nn.Linear default bias init: U(-1/sqrt(fan_in), 1/sqrt(fan_in))
    bound = 1.0 / jnp.sqrt(jnp.asarray(fan_in, jnp.float32))
    return jax.random.uniform(key, (fan_out,), jnp.float32, -bound, bound)


if __name__ == "__main__":
    INP, HID, OUT, BATCH = 32, 16, 8, 16

    key = jax.random.PRNGKey(0)
    k_x, k_vw, k_vb, k_ww, k_wb = jax.random.split(key, 5)

    xb = jax.random.normal(k_x, (BATCH, INP), jnp.float32)
    v_w = xavier_uniform(k_vw, (HID, INP))      # V.weight
    v_b = linear_bias_init(k_vb, INP, HID)      # V.bias
    w_w = xavier_uniform(k_ww, (OUT, HID))      # W.weight
    w_b = linear_bias_init(k_wb, HID, OUT)      # W.bias

    params, dims = prepare_params(v_w, v_b, w_w, w_b)
    use_bf16_act = _default_bf16_act()

    # Batched call (single whole-batch tile).
    yb = ffnn_forward(xb, params, dims)
    # Batch that exercises the two-tile split + partial last tile (B=20, tb=16).
    xb2 = jnp.concatenate([xb, xb[:4]], axis=0)
    yb2 = ffnn_forward(xb2, params, dims)
    # Single-vector call: matches the PyTorch module's 1-D forward (LogSoftmax dim=0).
    y1 = ffnn_forward(xb[0], params, dims)
    jax.block_until_ready((yb, yb2, y1))

    # Reference mirroring the kernel's numerics (bf16 operands, f32 accumulate,
    # same activation dtype as the kernel picked for this chip).
    def ref(xr):
        h = jnp.dot(xr.astype(jnp.bfloat16), v_w.astype(jnp.bfloat16).T,
                    preferred_element_type=jnp.float32) + v_b
        if use_bf16_act:
            h = jnp.tanh(h.astype(jnp.bfloat16))
        else:
            h = jnp.tanh(h).astype(jnp.bfloat16)
        z = jnp.dot(h, w_w.astype(jnp.bfloat16).T,
                    preferred_element_type=jnp.float32) + w_b
        return jax.nn.log_softmax(z, axis=-1)

    yb_ref = ref(xb)
    yb2_ref = ref(xb2)
    assert yb.shape == (BATCH, OUT)
    assert yb2.shape == (BATCH + 4, OUT)
    assert y1.shape == (OUT,)
    assert jnp.allclose(yb, yb_ref, atol=2e-2, rtol=2e-2), (yb, yb_ref)
    assert jnp.allclose(yb2, yb2_ref, atol=2e-2, rtol=2e-2), (yb2, yb2_ref)
    assert jnp.allclose(y1, yb_ref[0], atol=2e-2, rtol=2e-2), (y1, yb_ref[0])

    # Loose check vs the full-f32 PyTorch-equivalent math (bf16 quantization).
    z32 = jnp.tanh(xb @ v_w.T + v_b) @ w_w.T + w_b
    y32 = jax.nn.log_softmax(z32, axis=-1)
    assert jnp.allclose(yb, y32, atol=1e-1), (yb, y32)

    print("KERNEL_OK")
</pallas_src>

<mosaic_0001>
module attributes {stable_mosaic.version = 11 : i64} {
  func.func @ffnn_kernel(%arg0: i32, %arg1: memref<16x128xbf16, #tpu.memory_space<vmem>>, %arg2: memref<128x128xbf16, #tpu.memory_space<vmem>>, %arg3: memref<1x128xf32, #tpu.memory_space<vmem>>, %arg4: memref<128x128xbf16, #tpu.memory_space<vmem>>, %arg5: memref<1x128xf32, #tpu.memory_space<vmem>>, %arg6: memref<16x128xf32, #tpu.memory_space<vmem>>) attributes {dimension_semantics = [#tpu.dimension_semantics<parallel>], iteration_bounds = array<i64: 1>, scalar_prefetch = 0 : i64, scratch_operands = 0 : i64, tpu.core_type = #tpu.core_type<tc>, window_params = [{transform_indices = @transform_0, window_bounds = array<i64: 16, 128>}, {pipeline_mode = #tpu.pipeline_mode<synchronous>, transform_indices = @transform_1, window_bounds = array<i64: 128, 128>}, {pipeline_mode = #tpu.pipeline_mode<synchronous>, transform_indices = @transform_2, window_bounds = array<i64: 1, 128>}, {pipeline_mode = #tpu.pipeline_mode<synchronous>, transform_indices = @transform_3, window_bounds = array<i64: 128, 128>}, {pipeline_mode = #tpu.pipeline_mode<synchronous>, transform_indices = @transform_4, window_bounds = array<i64: 1, 128>}, {transform_indices = @transform_5, window_bounds = array<i64: 16, 128>}]} {
    %c0 = arith.constant 0 : index
    %c0_0 = arith.constant 0 : index
    %0 = vector.load %arg1[%c0, %c0_0] : memref<16x128xbf16, #tpu.memory_space<vmem>>, vector<16x128xbf16>
    %c0_1 = arith.constant 0 : index
    %c0_2 = arith.constant 0 : index
    %1 = vector.load %arg2[%c0_1, %c0_2] : memref<128x128xbf16, #tpu.memory_space<vmem>>, vector<128x128xbf16>
    %cst = arith.constant dense<0.000000e+00> : vector<16x128xf32>
    %2 = tpu.matmul %0, %1, %cst {dimension_numbers = #tpu.dot_dimension_numbers<[1], [0], [0], [1], [0, 0, 1, 1], [], []>} : vector<16x128xbf16>, vector<128x128xbf16>, vector<16x128xf32> -> vector<16x128xf32>
    %c0_3 = arith.constant 0 : index
    %c0_4 = arith.constant 0 : index
    %3 = vector.load %arg3[%c0_3, %c0_4] : memref<1x128xf32, #tpu.memory_space<vmem>>, vector<1x128xf32>
    %4 = vector.broadcast %3 : vector<1x128xf32> to vector<16x128xf32>
    %5 = arith.addf %2, %4 : vector<16x128xf32>
    %6 = math.tanh %5 : vector<16x128xf32>
    %7 = arith.truncf %6 : vector<16x128xf32> to vector<16x128xbf16>
    %c0_5 = arith.constant 0 : index
    %c0_6 = arith.constant 0 : index
    %8 = vector.load %arg4[%c0_5, %c0_6] : memref<128x128xbf16, #tpu.memory_space<vmem>>, vector<128x128xbf16>
    %cst_7 = arith.constant dense<0.000000e+00> : vector<16x128xf32>
    %9 = tpu.matmul %7, %8, %cst_7 {dimension_numbers = #tpu.dot_dimension_numbers<[1], [0], [0], [1], [0, 0, 1, 1], [], []>} : vector<16x128xbf16>, vector<128x128xbf16>, vector<16x128xf32> -> vector<16x128xf32>
    %c0_8 = arith.constant 0 : index
    %c0_9 = arith.constant 0 : index
    %10 = vector.load %arg5[%c0_8, %c0_9] : memref<1x128xf32, #tpu.memory_space<vmem>>, vector<1x128xf32>
    %11 = vector.broadcast %10 : vector<1x128xf32> to vector<16x128xf32>
    %12 = arith.addf %9, %11 : vector<16x128xf32>
    %cst_10 = arith.constant dense<0xFF800000> : vector<16xf32>
    %13 = vector.multi_reduction <maximumf>, %12, %cst_10 [1] : vector<16x128xf32> to vector<16xf32>
    %14 = vector.shape_cast %13 : vector<16xf32> to vector<16x1xf32>
    %15 = vector.broadcast %14 : vector<16x1xf32> to vector<16x128xf32>
    %16 = arith.subf %12, %15 : vector<16x128xf32>
    %17 = math.exp %16 : vector<16x128xf32>
    %cst_11 = arith.constant dense<0.000000e+00> : vector<16xf32>
    %18 = vector.multi_reduction <add>, %17, %cst_11 [1] : vector<16x128xf32> to vector<16xf32>
    %19 = vector.shape_cast %18 : vector<16xf32> to vector<16x1xf32>
    %20 = math.log %19 : vector<16x1xf32>
    %21 = vector.broadcast %20 : vector<16x1xf32> to vector<16x128xf32>
    %22 = arith.subf %16, %21 : vector<16x128xf32>
    %c0_12 = arith.constant 0 : index
    %c0_13 = arith.constant 0 : index
    %23 = vector.load %arg6[%c0_12, %c0_13] : memref<16x128xf32, #tpu.memory_space<vmem>>, vector<16x128xf32>
    tpu.vector_store %arg6[%c0_12, %c0_13], %22 {strides = array<i32>} : memref<16x128xf32, #tpu.memory_space<vmem>>, vector<16x128xf32>,
    return
  }
  func.func @transform_0(%arg0: i32) -> (i32, i32) {
    %c0_i32 = arith.constant 0 : i32
    %c0_i32_0 = arith.constant 0 : i32
    return %arg0, %c0_i32 : i32, i32
  }
  func.func @transform_1(%arg0: i32) -> (i32, i32) {
    %c0_i32 = arith.constant 0 : i32
    %c0_i32_0 = arith.constant 0 : i32
    %c0_i32_1 = arith.constant 0 : i32
    return %c0_i32, %c0_i32_0 : i32, i32
  }
  func.func @transform_2(%arg0: i32) -> (i32, i32) {
    %c0_i32 = arith.constant 0 : i32
    %c0_i32_0 = arith.constant 0 : i32
    %c0_i32_1 = arith.constant 0 : i32
    return %c0_i32, %c0_i32_0 : i32, i32
  }
  func.func @transform_3(%arg0: i32) -> (i32, i32) {
    %c0_i32 = arith.constant 0 : i32
    %c0_i32_0 = arith.constant 0 : i32
    %c0_i32_1 = arith.constant 0 : i32
    return %c0_i32, %c0_i32_0 : i32, i32
  }
  func.func @transform_4(%arg0: i32) -> (i32, i32) {
    %c0_i32 = arith.constant 0 : i32
    %c0_i32_0 = arith.constant 0 : i32
    %c0_i32_1 = arith.constant 0 : i32
    return %c0_i32, %c0_i32_0 : i32, i32
  }
  func.func @transform_5(%arg0: i32) -> (i32, i32) {
    %c0_i32 = arith.constant 0 : i32
    %c0_i32_0 = arith.constant 0 : i32
    return %arg0, %c0_i32 : i32, i32
  }
}

</mosaic_0001>

<llo_original>
// kernel: tpu_custom_call.1
$region0: #{tpu_custom_call.1}
  #allocation0 [shape = 'u32[]', space=smem, size = 0x4, offset = 0x4, fixed_abs, tag = 'smem constant byte address 0x4 - core index']
  #allocation1 [shape = 'u32[144,128]{1,0:T(1,128)}', space=vmem, size = 0x12000, scoped, tag = 'internal scratch']
  %s0 = inlined_call_operand.hbm [shape: bf16[16,128], index: 0, kind: input, shape index: {}]
  %s1 = inlined_call_operand.hbm [shape: bf16[128,128], index: 1, kind: input, shape index: {}]
  %s2 = inlined_call_operand.vmem [shape: f32[1,128], index: 2, kind: input, shape index: {}]
  %s3 = inlined_call_operand.hbm [shape: bf16[128,128], index: 3, kind: input, shape index: {}]
  %s4 = inlined_call_operand.vmem [shape: f32[1,128], index: 4, kind: input, shape index: {}]
  %s5 = inlined_call_operand.hbm [shape: f32[16,128], index: 5, kind: output, shape index: {}]
  %s6 = sld [smem:[#allocation0]]
  $region42: #{tpu_custom_call.1} parent=0
    _
  %s8 = ssub.s32 1, %s6
  %s9 = scalar_select 0, %s8, %s6
  $region1: #{tpu_custom_call.1} parent=0
    #allocation2 [shape = 'u8[4096]{0}', space=vmem, size = 0x1000, scoped, tag = 'input window, operand 0, single buffered']
    #allocation3 [shape = 's32[1]{0}', space=sflag, size = 0x4, scoped, tag = 'scoped memory for tpu_custom_call.1']
    #allocation4 [shape = 's32[1]{0}', space=sflag, size = 0x4, scoped, tag = 'scoped memory for tpu_custom_call.1']
    #allocation5 [shape = 'u8[32768]{0}', space=vmem, size = 0x8000, scoped, tag = 'input window, operand 1, single buffered']
    #allocation6 [shape = 's32[1]{0}', space=sflag, size = 0x4, scoped, tag = 'scoped memory for tpu_custom_call.1']
    #allocation7 [shape = 'u8[32768]{0}', space=vmem, size = 0x8000, scoped, tag = 'input window, operand 3, single buffered']
    #allocation8 [shape = 'u8[8192]{0}', space=vmem, size = 0x2000, scoped, tag = 'output window, operand 0, single buffered']
    %10 = vsyncpa [#allocation3], 0
    %11 = vsyncpa [#allocation6], 0
    %12 = vsyncpa [#allocation4], 0
    // Predicated region
    $region2: #{tpu_custom_call.1} parent=1 // pred_check
      _
    $region3: #{tpu_custom_call.1} parent=1 // pred_check_branch
      %14 = sbr.rel (0) target = $region5
    $region4: #{tpu_custom_call.1} parent=1 // pred_region
      %s16 = ssub.s32 128, 128
      %17 = vsyncadd [#allocation3], %s16
      %s18 = sshll.u32 [#allocation2], 4
      %s19 = int_to_ptr.vmem [resolvable:$true] %s18
      %24 = dma.hbm_to_vmem [thread:$0]  %s0, 128, %s19, [#allocation3], 64, 64, 4
    $region5: #{tpu_custom_call.1} parent=1 // pred_fallthru
      _
    // Predicated region
    $region6: #{tpu_custom_call.1} parent=1 // pred_check
      _
    $region7: #{tpu_custom_call.1} parent=1 // pred_check_branch
      %26 = sbr.rel (0) target = $region9
    $region8: #{tpu_custom_call.1} parent=1 // pred_region
      %s28 = ssub.s32 1024, 1024
      %29 = vsyncadd [#allocation6], %s28
      %s30 = sshll.u32 [#allocation5], 4
      %s31 = int_to_ptr.vmem [resolvable:$true] %s30
      %36 = dma.hbm_to_vmem [thread:$0]  %s1, 1024, %s31, [#allocation6], 64, 64, 4
    $region9: #{tpu_custom_call.1} parent=1 // pred_fallthru
      _
    // Predicated region
    $region10: #{tpu_custom_call.1} parent=1 // pred_check
      _
    $region11: #{tpu_custom_call.1} parent=1 // pred_check_branch
      %38 = sbr.rel (0) target = $region13
    $region12: #{tpu_custom_call.1} parent=1 // pred_region
      _
    $region13: #{tpu_custom_call.1} parent=1 // pred_fallthru
      _
    // Predicated region
    $region14: #{tpu_custom_call.1} parent=1 // pred_check
      _
    $region15: #{tpu_custom_call.1} parent=1 // pred_check_branch
      %40 = sbr.rel (0) target = $region17
    $region16: #{tpu_custom_call.1} parent=1 // pred_region
      %s42 = ssub.s32 1024, 1024
      %43 = vsyncadd [#allocation6], %s42
      %s44 = sshll.u32 [#allocation7], 4
      %s45 = int_to_ptr.vmem [resolvable:$true] %s44
      %50 = dma.hbm_to_vmem [thread:$0]  %s3, 1024, %s45, [#allocation6], 64, 64, 4
    $region17: #{tpu_custom_call.1} parent=1 // pred_fallthru
      _
    // Predicated region
    $region18: #{tpu_custom_call.1} parent=1 // pred_check
      _
    $region19: #{tpu_custom_call.1} parent=1 // pred_check_branch
      %52 = sbr.rel (0) target = $region21
    $region20: #{tpu_custom_call.1} parent=1 // pred_region
      _
    $region21: #{tpu_custom_call.1} parent=1 // pred_fallthru
      _
    // Predicated region
    $region22: #{tpu_custom_call.1} parent=1 // pred_check
      _
    $region23: #{tpu_custom_call.1} parent=1 // pred_check_branch
      %54 = sbr.rel (0) target = $region25
    $region24: #{tpu_custom_call.1} parent=1 // pred_region
      %55 = dma.done [#allocation3], 128
    $region25: #{tpu_custom_call.1} parent=1 // pred_fallthru
      _
    // Predicated region
    $region26: #{tpu_custom_call.1} parent=1 // pred_check
      _
    $region27: #{tpu_custom_call.1} parent=1 // pred_check_branch
      %57 = sbr.rel (0) target = $region29
    $region28: #{tpu_custom_call.1} parent=1 // pred_region
      %58 = dma.done [#allocation6], 1024
    $region29: #{tpu_custom_call.1} parent=1 // pred_fallthru
      _
    // Predicated region
    $region30: #{tpu_custom_call.1} parent=1 // pred_check
      _
    $region31: #{tpu_custom_call.1} parent=1 // pred_check_branch
      %60 = sbr.rel (0) target = $region33
    $region32: #{tpu_custom_call.1} parent=1 // pred_region
      %61 = dma.done [#allocation6], 1024
    $region33: #{tpu_custom_call.1} parent=1 // pred_fallthru
      _
    %v63 = vld [vmem:[#allocation2] sm:$0xf]
    %v64 = vld [vmem:[#allocation2 + $0x4] sm:$0xf]
    %v65 = vld [vmem:[#allocation5] sm:$0xf]
    %v66 = vld [vmem:[#allocation5 + $0x4] sm:$0xf]
    %v67 = vld [vmem:[#allocation5 + $0x8] sm:$0xf]
    %v68 = vld [vmem:[#allocation5 + $0xc] sm:$0xf]
    %v69 = vld [vmem:[#allocation5 + $0x10] sm:$0xf]
    %v70 = vld [vmem:[#allocation5 + $0x14] sm:$0xf]
    %v71 = vld [vmem:[#allocation5 + $0x18] sm:$0xf]
    %v72 = vld [vmem:[#allocation5 + $0x1c] sm:$0xf]
    %v73 = vld [vmem:[#allocation5 + $0x20] sm:$0xf]
    %v74 = vld [vmem:[#allocation5 + $0x24] sm:$0xf]
    %v75 = vld [vmem:[#allocation5 + $0x28] sm:$0xf]
    %v76 = vld [vmem:[#allocation5 + $0x2c] sm:$0xf]
    %v77 = vld [vmem:[#allocation5 + $0x30] sm:$0xf]
    %v78 = vld [vmem:[#allocation5 + $0x34] sm:$0xf]
    %v79 = vld [vmem:[#allocation5 + $0x38] sm:$0xf]
    %v80 = vld [vmem:[#allocation5 + $0x3c] sm:$0xf]
    %v81 = vld [vmem:[%s2] sm:$0x1]
    %v83 = vlaneseq
    %v84 = vshrl.u32 %v83, 7
    %v85 = vsub.s32 0, %v84
    %v86 = vrot.slane %v81, %v85
    %v90 = vunpack.c.l.b16 %v63
    %v91 = vunpack.c.l.b16 %v64
    %v92 = vpack.c.b16 %v91, %v90
    %v110 = vunpack.c.l.b16 %v65
    %v111 = vunpack.c.l.b16 %v66
    %v112 = vunpack.c.l.b16 %v67
    %v113 = vunpack.c.l.b16 %v68
    %v114 = vunpack.c.l.b16 %v69
    %v115 = vunpack.c.l.b16 %v70
    %v116 = vunpack.c.l.b16 %v71
    %v117 = vunpack.c.l.b16 %v72
    %v118 = vunpack.c.l.b16 %v73
    %v119 = vunpack.c.l.b16 %v74
    %v120 = vunpack.c.l.b16 %v75
    %v121 = vunpack.c.l.b16 %v76
    %v122 = vunpack.c.l.b16 %v77
    %v123 = vunpack.c.l.b16 %v78
    %v124 = vunpack.c.l.b16 %v79
    %v125 = vunpack.c.l.b16 %v80
    %v126 = vpack.c.b16 %v111, %v110
    %v127 = vpack.c.b16 %v113, %v112
    %v128 = vpack.c.b16 %v115, %v114
    %v129 = vpack.c.b16 %v117, %v116
    %v130 = vpack.c.b16 %v119, %v118
    %v131 = vpack.c.b16 %v121, %v120
    %v132 = vpack.c.b16 %v123, %v122
    %v133 = vpack.c.b16 %v125, %v124
    %142 = vmatprep.subr.bf16.mxu0 0
    %143 = vmatpush1.bf16.msra.mxu0 %v126
    %144 = vmatprep.subr.bf16.mxu0 0
    %145 = vmatpush1.bf16.msra.mxu0 %v127
    %146 = vmatprep.subr.bf16.mxu0 0
    %147 = vmatpush1.bf16.msra.mxu0 %v128
    %148 = vmatprep.subr.bf16.mxu0 0
    %149 = vmatpush1.bf16.msra.mxu0 %v129
    %150 = vmatprep.subr.bf16.mxu0 0
    %151 = vmatpush1.bf16.msra.mxu0 %v130
    %152 = vmatprep.subr.bf16.mxu0 0
    %153 = vmatpush1.bf16.msra.mxu0 %v131
    %154 = vmatprep.subr.bf16.mxu0 0
    %155 = vmatpush1.bf16.msra.mxu0 %v132
    %156 = vmatprep.subr.bf16.mxu0 0
    %157 = vmatpush1.bf16.msra.mxu0 %v133
    %158 = vmatprep.subr.bf16.mxu0 0
    %159 = vmatpush1.bf16.msra.mxu0 0
    %160 = vmatprep.subr.bf16.mxu0 0
    %161 = vmatpush1.bf16.msra.mxu0 0
    %162 = vmatprep.subr.bf16.mxu0 0
    %163 = vmatpush1.bf16.msra.mxu0 0
    %164 = vmatprep.subr.bf16.mxu0 0
    %165 = vmatpush1.bf16.msra.mxu0 0
    %166 = vmatprep.subr.bf16.mxu0 0
    %167 = vmatpush1.bf16.msra.mxu0 0
    %168 = vmatprep.subr.bf16.mxu0 0
    %169 = vmatpush1.bf16.msra.mxu0 0
    %170 = vmatprep.subr.bf16.mxu0 0
    %171 = vmatpush1.bf16.msra.mxu0 0
    %172 = vmatprep.subr.bf16.mxu0 0
    %173 = vmatpush1.bf16.msra.mxu0 0
    %174 = vmatprep.mubr.bf16.mxu0 0
    %175 = vmatmul.mubr.bf16.gmra.mrb[0].mxu0 %v92
    %v176 = vpop.f32.mrb[0].mxu0
    %v177 = vadd.f32 %v86, %v176
    %v178 = vpop.f32.mrb[0].mxu0
    %v179 = vpop.f32.mrb[0].mxu0
    %v180 = vadd.f32 %v86, %v179
    %v181 = vpop.f32.mrb[0].mxu0
    %182 = vdwg.mxu0
    %v183 = vtanh.pop %v177
    %v184 = vtanh.pop %v180
    %v185 = vpack.c.bf16 %v184, %v183
    %v186 = vld [vmem:[#allocation7] sm:$0xf]
    %v187 = vld [vmem:[#allocation7 + $0x4] sm:$0xf]
    %v188 = vld [vmem:[#allocation7 + $0x8] sm:$0xf]
    %v189 = vld [vmem:[#allocation7 + $0xc] sm:$0xf]
    %v190 = vld [vmem:[#allocation7 + $0x10] sm:$0xf]
    %v191 = vld [vmem:[#allocation7 + $0x14] sm:$0xf]
    %v192 = vld [vmem:[#allocation7 + $0x18] sm:$0xf]
    %v193 = vld [vmem:[#allocation7 + $0x1c] sm:$0xf]
    %v194 = vld [vmem:[#allocation7 + $0x20] sm:$0xf]
    %v195 = vld [vmem:[#allocation7 + $0x24] sm:$0xf]
    %v196 = vld [vmem:[#allocation7 + $0x28] sm:$0xf]
    %v197 = vld [vmem:[#allocation7 + $0x2c] sm:$0xf]
    %v198 = vld [vmem:[#allocation7 + $0x30] sm:$0xf]
    %v199 = vld [vmem:[#allocation7 + $0x34] sm:$0xf]
    %v200 = vld [vmem:[#allocation7 + $0x38] sm:$0xf]
    %v201 = vld [vmem:[#allocation7 + $0x3c] sm:$0xf]
    %v202 = vld [vmem:[%s4] sm:$0x1]
    %v204 = vlaneseq
    %v205 = vshrl.u32 %v204, 7
    %v206 = vsub.s32 0, %v205
    %v207 = vrot.slane %v202, %v206
    %v225 = vunpack.c.l.b16 %v186
    %v226 = vunpack.c.l.b16 %v187
    %v227 = vunpack.c.l.b16 %v188
    %v228 = vunpack.c.l.b16 %v189
    %v229 = vunpack.c.l.b16 %v190
    %v230 = vunpack.c.l.b16 %v191
    %v231 = vunpack.c.l.b16 %v192
    %v232 = vunpack.c.l.b16 %v193
    %v233 = vunpack.c.l.b16 %v194
    %v234 = vunpack.c.l.b16 %v195
    %v235 = vunpack.c.l.b16 %v196
    %v236 = vunpack.c.l.b16 %v197
    %v237 = vunpack.c.l.b16 %v198
    %v238 = vunpack.c.l.b16 %v199
    %v239 = vunpack.c.l.b16 %v200
    %v240 = vunpack.c.l.b16 %v201
    %v241 = vpack.c.b16 %v226, %v225
    %v242 = vpack.c.b16 %v228, %v227
    %v243 = vpack.c.b16 %v230, %v229
    %v244 = vpack.c.b16 %v232, %v231
    %v245 = vpack.c.b16 %v234, %v233
    %v246 = vpack.c.b16 %v236, %v235
    %v247 = vpack.c.b16 %v238, %v237
    %v248 = vpack.c.b16 %v240, %v239
    %257 = vmatprep.subr.bf16.mxu0 0
    %258 = vmatpush1.bf16.msra.mxu0 %v241
    %259 = vmatprep.subr.bf16.mxu0 0
    %260 = vmatpush1.bf16.msra.mxu0 %v242
    %261 = vmatprep.subr.bf16.mxu0 0
    %262 = vmatpush1.bf16.msra.mxu0 %v243
    %263 = vmatprep.subr.bf16.mxu0 0
    %264 = vmatpush1.bf16.msra.mxu0 %v244
    %265 = vmatprep.subr.bf16.mxu0 0
    %266 = vmatpush1.bf16.msra.mxu0 %v245
    %267 = vmatprep.subr.bf16.mxu0 0
    %268 = vmatpush1.bf16.msra.mxu0 %v246
    %269 = vmatprep.subr.bf16.mxu0 0
    %270 = vmatpush1.bf16.msra.mxu0 %v247
    %271 = vmatprep.subr.bf16.mxu0 0
    %272 = vmatpush1.bf16.msra.mxu0 %v248
    %273 = vmatprep.subr.bf16.mxu0 0
    %274 = vmatpush1.bf16.msra.mxu0 0
    %275 = vmatprep.subr.bf16.mxu0 0
    %276 = vmatpush1.bf16.msra.mxu0 0
    %277 = vmatprep.subr.bf16.mxu0 0
    %278 = vmatpush1.bf16.msra.mxu0 0
    %279 = vmatprep.subr.bf16.mxu0 0
    %280 = vmatpush1.bf16.msra.mxu0 0
    %281 = vmatprep.subr.bf16.mxu0 0
    %282 = vmatpush1.bf16.msra.mxu0 0
    %283 = vmatprep.subr.bf16.mxu0 0
    %284 = vmatpush1.bf16.msra.mxu0 0
    %285 = vmatprep.subr.bf16.mxu0 0
    %286 = vmatpush1.bf16.msra.mxu0 0
    %287 = vmatprep.subr.bf16.mxu0 0
    %288 = vmatpush1.bf16.msra.mxu0 0
    %289 = vmatprep.mubr.bf16.mxu0 0
    %290 = vmatmul.mubr.bf16.gmra.mrb[0].mxu0 %v185
    %v291 = vpop.f32.mrb[0].mxu0
    %v292 = vadd.f32 %v207, %v291
    %v293 = vpop.f32.mrb[0].mxu0
    %v294 = vpop.f32.mrb[0].mxu0
    %v295 = vadd.f32 %v207, %v294
    %v296 = vpop.f32.mrb[0].mxu0
    %297 = vdwg.mxu0
    %298 = vmax.xlane.f32.xlu0 %v292
    %v299 = vpop.xlane.xlu0 %298
    %300 = vmax.xlane.f32.xlu0 %v295
    %v301 = vpop.xlane.xlu0 %300
    %v302 = vsub.f32 %v292, %v299
    %v303 = vsub.f32 %v295, %v301
    %v304 = vmul.f32 %v302, 1.442695
    %v305 = vpow.pop %v304
    %v306 = vmul.f32 %v303, 1.442695
    %v307 = vpow.pop %v306
    %308 = vadd.xlane.f32.xlu0 %v305
    %v309 = vpop.xlane.xlu0 %308
    %310 = vadd.xlane.f32.xlu0 %v307
    %v311 = vpop.xlane.xlu0 %310
    %v312 = vlog2.pop %v309
    %v313 = vmul.f32 %v312, 0.6931472
    %v314 = vlog2.pop %v311
    %v315 = vmul.f32 %v314, 0.6931472
    %v316 = vsub.f32 %v302, %v313
    %v317 = vsub.f32 %v303, %v315
    %318 = vst [vmem:[#allocation8] sm:$0xff] %v316
    %319 = vst [vmem:[#allocation8 + $0x8] sm:$0xff] %v317
    // Predicated region
    $region34: #{tpu_custom_call.1} parent=1 // pred_check
      _
    $region35: #{tpu_custom_call.1} parent=1 // pred_check_branch
      %321 = sbr.rel (0) target = $region37
    $region36: #{tpu_custom_call.1} parent=1 // pred_region
      %s323 = ssub.s32 256, 256
      %324 = vsyncadd [#allocation4], %s323
      %s325 = sshll.u32 [#allocation8], 4
      %s326 = int_to_ptr.vmem [resolvable:$true] %s325
      %331 = dma.vmem_to_hbm [thread:$0]  %s326, 256, %s5, [#allocation4], 128, 128, 8
    $region37: #{tpu_custom_call.1} parent=1 // pred_fallthru
      _
    // Predicated region
    $region38: #{tpu_custom_call.1} parent=1 // pred_check
      _
    $region39: #{tpu_custom_call.1} parent=1 // pred_check_branch
      %333 = sbr.rel (0) target = $region41
    $region40: #{tpu_custom_call.1} parent=1 // pred_region
      %334 = dma.done [#allocation4], 256
    $region41: #{tpu_custom_call.1} parent=1 // pred_fallthru
      _
    %335 = vsyncpa [#allocation3], 1
    %336 = vsyncpa [#allocation6], 1
    %337 = vsyncpa [#allocation4], 1

</llo_original>
